<compile_context>
chip_gen: v6e
topology: v6e:2x2x1
jax: 0.10.0
libtpu: 0.0.40
codegen_flags: <defaults>
</compile_context>

<pallas_src>
import functools

import jax
import jax.numpy as jnp
from jax.experimental import pallas as pl
from jax.experimental.pallas import tpu as pltpu


def _sublayer_connection_kernel(x_ref, y_ref, w_ref, b_ref, o_ref, *, eps, hidden):
    # x_ref, y_ref, o_ref: (TM, H) tiles; w_ref, b_ref: (1, H)
    x = x_ref[...].astype(jnp.float32)
    y = y_ref[...].astype(jnp.float32)

    # dropout in eval mode == identity
    # TODO(synk): training-mode dropout (pltpu.prng_random_bits mask) not wired in.
    z = x + y

    mean = jnp.mean(z, axis=-1, keepdims=True)
    d = z - mean
    # torch.std default: unbiased (divide by N-1)
    var = jnp.sum(d * d, axis=-1, keepdims=True) * jnp.float32(1.0 / (hidden - 1))
    std = jnp.sqrt(var)

    # Per-row reciprocal (TM, 1): one divide per row instead of one per element.
    # (VPU/EUP are nowhere near saturation here; exact is fine.)
    inv = pl.reciprocal(std + jnp.float32(eps), approx=False)

    w = w_ref[...].astype(jnp.float32)   # (1, H), cast once per tile
    b = b_ref[...].astype(jnp.float32)
    o_ref[...] = (d * inv * w + b).astype(o_ref.dtype)


def _vmem_cap_bytes():
    """Per-core VMEM capacity minus headroom; falls back to v7x's 64 MiB."""
    try:
        cap = int(pltpu.get_tpu_info().vmem_capacity_bytes)
    except Exception:
        cap = 64 * 1024 * 1024
    return max(16 * 1024 * 1024, cap - 8 * 1024 * 1024)


def _choose_block_rows(rows, hidden, itemsize):
    """Pick a row-tile size.

    Target ~1 MiB per (TM, H) *f32* working buffer (the body upcasts to f32,
    so temporaries dominate VMEM), while guaranteeing >= ~8 grid steps on big
    problems so both v7x TensorCores get >=4 pipelined steps each.
    """
    sub = 16 if itemsize < 4 else 8          # sublane multiple for packed dtypes
    if rows <= sub:
        return rows                          # full-extent block is always legal

    target_f32_buffer_bytes = 1 * 1024 * 1024
    tm = max(sub, target_f32_buffer_bytes // max(1, hidden * 4))

    # Keep >= 8 grid steps (>= 4 per TensorCore on v7x) when the problem is
    # large enough; smaller tiles cost nothing at the HBM roofline.
    min_steps = 8
    if rows >= min_steps * sub:
        tm = min(tm, rows // min_steps)

    tm = min(tm, rows)
    tm = max(sub, (tm // sub) * sub)

    # Prefer an exact divisor of rows close below tm (avoids masked partial
    # stores on the last tile); otherwise keep tm and let Pallas mask it.
    if rows % tm != 0:
        d = tm
        while d >= max(sub, tm // 2):
            if rows % d == 0:
                return d
            d -= sub
    return tm


def sublayer_connection(x, sublayer_out, weight, bias, *, eps=1e-6, block_rows=None):
    """LayerNorm(x + sublayer_out) with torch-style (unbiased-std) LayerNorm.

    x, sublayer_out: (B, S, H);  weight, bias: (H,)
    """
    B, S, H = x.shape
    if H < 2:
        raise ValueError("hidden size must be >= 2 for unbiased std (N-1).")
    rows = B * S
    itemsize = jnp.dtype(x.dtype).itemsize

    if block_rows is None:
        block_rows = _choose_block_rows(rows, H, itemsize)

    # No padded copies: Pallas handles a partial last tile by masking stores;
    # the per-row reduction keeps any out-of-bounds garbage confined to
    # out-of-bounds (masked) output rows.
    grid = pl.cdiv(rows, block_rows)

    x2 = x.reshape(rows, H)
    y2 = sublayer_out.reshape(rows, H)
    w2 = weight.reshape(1, H)
    b2 = bias.reshape(1, H)

    kernel = functools.partial(_sublayer_connection_kernel, eps=eps, hidden=H)

    # Per grid step: 2 inputs + 1 output double-buffered at the input dtype,
    # plus ~4 whole-tile f32 temporaries (z, d, scaled result) in the body.
    per_step_elems = block_rows * H
    needed = 6 * per_step_elems * itemsize + 4 * per_step_elems * 4
    vmem_limit = int(min(_vmem_cap_bytes(), max(32 * 1024 * 1024, 2 * needed)))

    # TODO(synk): when the sublayer is itself a Pallas matmul, fuse this
    # residual+LayerNorm epilogue into its last-K-step finalize (output tile
    # resident across k, pl.when(k == last) does add+mean/std+affine) to cut
    # this stage's HBM traffic by ~2/3.
    out2 = pl.pallas_call(
        kernel,
        out_shape=jax.ShapeDtypeStruct((rows, H), x.dtype),
        grid_spec=pltpu.PrefetchScalarGridSpec(
            num_scalar_prefetch=0,
            grid=(grid,),
            in_specs=[
                pl.BlockSpec((block_rows, H), lambda i: (i, 0)),
                pl.BlockSpec((block_rows, H), lambda i: (i, 0)),
                pl.BlockSpec((1, H), lambda i: (0, 0)),
                pl.BlockSpec((1, H), lambda i: (0, 0)),
            ],
            out_specs=pl.BlockSpec((block_rows, H), lambda i: (i, 0)),
        ),
        compiler_params=pltpu.CompilerParams(
            dimension_semantics=("parallel",),
            vmem_limit_bytes=vmem_limit,
        ),
    )(x2, y2, w2, b2)

    return out2.reshape(B, S, H)


def reference(x, sublayer_out, weight, bias, eps=1e-6):
    z = x + sublayer_out
    mean = jnp.mean(z, axis=-1, keepdims=True)
    d = z - mean
    var = jnp.sum(d * d, axis=-1, keepdims=True) / (z.shape[-1] - 1)
    std = jnp.sqrt(var)
    return weight * d / (std + eps) + bias


if __name__ == "__main__":
    key = jax.random.PRNGKey(0)
    # Lane-dense hidden size (multiple of 128) — H < 128 wastes 75% of lanes
    # and forces masked stores on every generation.
    B, S, H = 2, 8, 128

    kx, kw, kg, kb = jax.random.split(key, 4)
    x = jax.random.normal(kx, (B, S, H), dtype=jnp.float32)

    # LayerNorm params (module inits ones/zeros; perturb to exercise the affine).
    ln_weight = 1.0 + 0.1 * jax.random.normal(kg, (H,), dtype=jnp.float32)
    ln_bias = 0.1 * jax.random.normal(kb, (H,), dtype=jnp.float32)

    # A simple deterministic "sublayer" evaluated in plain JAX; the module
    # treats it as an opaque callable.
    W_sub = jax.random.normal(kw, (H, H), dtype=jnp.float32) * 0.05
    sublayer = lambda t: t @ W_sub
    y = sublayer(x)

    out = sublayer_connection(x, y, ln_weight, ln_bias)
    out = jax.block_until_ready(out)

    ref = reference(x, y, ln_weight, ln_bias)
    assert out.shape == (B, S, H)
    assert jnp.allclose(out, ref, atol=1e-5, rtol=1e-5), "mismatch vs reference"

    print("KERNEL_OK")
</pallas_src>

<mosaic_0001>
module attributes {stable_mosaic.version = 11 : i64} {
  func.func @_sublayer_connection_kernel(%arg0: i32, %arg1: memref<16x128xf32, #tpu.memory_space<vmem>>, %arg2: memref<16x128xf32, #tpu.memory_space<vmem>>, %arg3: memref<1x128xf32, #tpu.memory_space<vmem>>, %arg4: memref<1x128xf32, #tpu.memory_space<vmem>>, %arg5: memref<16x128xf32, #tpu.memory_space<vmem>>) attributes {dimension_semantics = [#tpu.dimension_semantics<parallel>], iteration_bounds = array<i64: 1>, scalar_prefetch = 0 : i64, scratch_operands = 0 : i64, tpu.core_type = #tpu.core_type<tc>, window_params = [{transform_indices = @transform_0, window_bounds = array<i64: 16, 128>}, {transform_indices = @transform_1, window_bounds = array<i64: 16, 128>}, {pipeline_mode = #tpu.pipeline_mode<synchronous>, transform_indices = @transform_2, window_bounds = array<i64: 1, 128>}, {pipeline_mode = #tpu.pipeline_mode<synchronous>, transform_indices = @transform_3, window_bounds = array<i64: 1, 128>}, {transform_indices = @transform_4, window_bounds = array<i64: 16, 128>}]} {
    %c0 = arith.constant 0 : index
    %c0_0 = arith.constant 0 : index
    %0 = vector.load %arg1[%c0, %c0_0] : memref<16x128xf32, #tpu.memory_space<vmem>>, vector<16x128xf32>
    %c0_1 = arith.constant 0 : index
    %c0_2 = arith.constant 0 : index
    %1 = vector.load %arg2[%c0_1, %c0_2] : memref<16x128xf32, #tpu.memory_space<vmem>>, vector<16x128xf32>
    %2 = arith.addf %0, %1 : vector<16x128xf32>
    %cst = arith.constant dense<0.000000e+00> : vector<16xf32>
    %3 = vector.multi_reduction <add>, %2, %cst [1] : vector<16x128xf32> to vector<16xf32>
    %4 = vector.shape_cast %3 : vector<16xf32> to vector<16x1xf32>
    %cst_3 = arith.constant 1.280000e+02 : f32
    %5 = vector.broadcast %cst_3 : f32 to vector<16x1xf32>
    %6 = arith.divf %4, %5 : vector<16x1xf32>
    %7 = vector.broadcast %6 : vector<16x1xf32> to vector<16x128xf32>
    %8 = arith.subf %2, %7 : vector<16x128xf32>
    %9 = arith.mulf %8, %8 : vector<16x128xf32>
    %cst_4 = arith.constant dense<0.000000e+00> : vector<16xf32>
    %10 = vector.multi_reduction <add>, %9, %cst_4 [1] : vector<16x128xf32> to vector<16xf32>
    %11 = vector.shape_cast %10 : vector<16xf32> to vector<16x1xf32>
    %cst_5 = arith.constant 0.00787401571 : f32
    %12 = vector.broadcast %cst_5 : f32 to vector<16x1xf32>
    %13 = arith.mulf %11, %12 : vector<16x1xf32>
    %14 = math.sqrt %13 : vector<16x1xf32>
    %cst_6 = arith.constant 9.99999997E-7 : f32
    %15 = vector.broadcast %cst_6 : f32 to vector<16x1xf32>
    %16 = arith.addf %14, %15 : vector<16x1xf32>
    %17 = tpu.reciprocal %16 : vector<16x1xf32> -> vector<16x1xf32>
    %c0_7 = arith.constant 0 : index
    %c0_8 = arith.constant 0 : index
    %18 = vector.load %arg3[%c0_7, %c0_8] : memref<1x128xf32, #tpu.memory_space<vmem>>, vector<1x128xf32>
    %c0_9 = arith.constant 0 : index
    %c0_10 = arith.constant 0 : index
    %19 = vector.load %arg4[%c0_9, %c0_10] : memref<1x128xf32, #tpu.memory_space<vmem>>, vector<1x128xf32>
    %20 = vector.broadcast %17 : vector<16x1xf32> to vector<16x128xf32>
    %21 = arith.mulf %8, %20 : vector<16x128xf32>
    %22 = vector.broadcast %18 : vector<1x128xf32> to vector<16x128xf32>
    %23 = arith.mulf %21, %22 : vector<16x128xf32>
    %24 = vector.broadcast %19 : vector<1x128xf32> to vector<16x128xf32>
    %25 = arith.addf %23, %24 : vector<16x128xf32>
    %c0_11 = arith.constant 0 : index
    %c0_12 = arith.constant 0 : index
    %26 = vector.load %arg5[%c0_11, %c0_12] : memref<16x128xf32, #tpu.memory_space<vmem>>, vector<16x128xf32>
    tpu.vector_store %arg5[%c0_11, %c0_12], %25 {strides = array<i32>} : memref<16x128xf32, #tpu.memory_space<vmem>>, vector<16x128xf32>,
    return
  }
  func.func @transform_0(%arg0: i32) -> (i32, i32) {
    %c0_i32 = arith.constant 0 : i32
    %c0_i32_0 = arith.constant 0 : i32
    return %arg0, %c0_i32 : i32, i32
  }
  func.func @transform_1(%arg0: i32) -> (i32, i32) {
    %c0_i32 = arith.constant 0 : i32
    %c0_i32_0 = arith.constant 0 : i32
    return %arg0, %c0_i32 : i32, i32
  }
  func.func @transform_2(%arg0: i32) -> (i32, i32) {
    %c0_i32 = arith.constant 0 : i32
    %c0_i32_0 = arith.constant 0 : i32
    %c0_i32_1 = arith.constant 0 : i32
    return %c0_i32, %c0_i32_0 : i32, i32
  }
  func.func @transform_3(%arg0: i32) -> (i32, i32) {
    %c0_i32 = arith.constant 0 : i32
    %c0_i32_0 = arith.constant 0 : i32
    %c0_i32_1 = arith.constant 0 : i32
    return %c0_i32, %c0_i32_0 : i32, i32
  }
  func.func @transform_4(%arg0: i32) -> (i32, i32) {
    %c0_i32 = arith.constant 0 : i32
    %c0_i32_0 = arith.constant 0 : i32
    return %arg0, %c0_i32 : i32, i32
  }
}

</mosaic_0001>

<llo_original>
// kernel: tpu_custom_call.1
$region0: #{tpu_custom_call.1}
  #allocation0 [shape = 'u32[]', space=smem, size = 0x4, offset = 0x4, fixed_abs, tag = 'smem constant byte address 0x4 - core index']
  #allocation1 [shape = 'u32[144,128]{1,0:T(1,128)}', space=vmem, size = 0x12000, scoped, tag = 'internal scratch']
  %s0 = inlined_call_operand.hbm [shape: f32[16,128], index: 0, kind: input, shape index: {}]
  %s1 = inlined_call_operand.hbm [shape: f32[16,128], index: 1, kind: input, shape index: {}]
  %s2 = inlined_call_operand.vmem [shape: f32[1,128], index: 2, kind: input, shape index: {}]
  %s3 = inlined_call_operand.vmem [shape: f32[1,128], index: 3, kind: input, shape index: {}]
  %s4 = inlined_call_operand.hbm [shape: f32[16,128], index: 4, kind: output, shape index: {}]
  %s5 = sld [smem:[#allocation0]]
  $region34: #{tpu_custom_call.1} parent=0
    _
  %s7 = ssub.s32 1, %s5
  %s8 = scalar_select 0, %s7, %s5
  $region1: #{tpu_custom_call.1} parent=0
    #allocation2 [shape = 'u8[8192]{0}', space=vmem, size = 0x2000, scoped, tag = 'input window, operand 0, single buffered']
    #allocation3 [shape = 's32[1]{0}', space=sflag, size = 0x4, scoped, tag = 'scoped memory for tpu_custom_call.1']
    #allocation4 [shape = 's32[1]{0}', space=sflag, size = 0x4, scoped, tag = 'scoped memory for tpu_custom_call.1']
    #allocation5 [shape = 'u8[8192]{0}', space=vmem, size = 0x2000, scoped, tag = 'input window, operand 1, single buffered']
    #allocation6 [shape = 's32[1]{0}', space=sflag, size = 0x4, scoped, tag = 'scoped memory for tpu_custom_call.1']
    #allocation7 [shape = 'u8[8192]{0}', space=vmem, size = 0x2000, scoped, tag = 'output window, operand 0, single buffered']
    %9 = vsyncpa [#allocation3], 0
    %10 = vsyncpa [#allocation6], 0
    %11 = vsyncpa [#allocation4], 0
    // Predicated region
    $region2: #{tpu_custom_call.1} parent=1 // pred_check
      _
    $region3: #{tpu_custom_call.1} parent=1 // pred_check_branch
      %13 = sbr.rel (0) target = $region5
    $region4: #{tpu_custom_call.1} parent=1 // pred_region
      %s15 = ssub.s32 256, 256
      %16 = vsyncadd [#allocation3], %s15
      %s17 = sshll.u32 [#allocation2], 4
      %s18 = int_to_ptr.vmem [resolvable:$true] %s17
      %23 = dma.hbm_to_vmem [thread:$0]  %s0, 256, %s18, [#allocation3], 128, 128, 8
    $region5: #{tpu_custom_call.1} parent=1 // pred_fallthru
      _
    // Predicated region
    $region6: #{tpu_custom_call.1} parent=1 // pred_check
      _
    $region7: #{tpu_custom_call.1} parent=1 // pred_check_branch
      %25 = sbr.rel (0) target = $region9
    $region8: #{tpu_custom_call.1} parent=1 // pred_region
      %s27 = ssub.s32 256, 256
      %28 = vsyncadd [#allocation6], %s27
      %s29 = sshll.u32 [#allocation5], 4
      %s30 = int_to_ptr.vmem [resolvable:$true] %s29
      %35 = dma.hbm_to_vmem [thread:$0]  %s1, 256, %s30, [#allocation6], 128, 128, 8
    $region9: #{tpu_custom_call.1} parent=1 // pred_fallthru
      _
    // Predicated region
    $region10: #{tpu_custom_call.1} parent=1 // pred_check
      _
    $region11: #{tpu_custom_call.1} parent=1 // pred_check_branch
      %37 = sbr.rel (0) target = $region13
    $region12: #{tpu_custom_call.1} parent=1 // pred_region
      _
    $region13: #{tpu_custom_call.1} parent=1 // pred_fallthru
      _
    // Predicated region
    $region14: #{tpu_custom_call.1} parent=1 // pred_check
      _
    $region15: #{tpu_custom_call.1} parent=1 // pred_check_branch
      %39 = sbr.rel (0) target = $region17
    $region16: #{tpu_custom_call.1} parent=1 // pred_region
      _
    $region17: #{tpu_custom_call.1} parent=1 // pred_fallthru
      _
    // Predicated region
    $region18: #{tpu_custom_call.1} parent=1 // pred_check
      _
    $region19: #{tpu_custom_call.1} parent=1 // pred_check_branch
      %41 = sbr.rel (0) target = $region21
    $region20: #{tpu_custom_call.1} parent=1 // pred_region
      %42 = dma.done [#allocation3], 256
    $region21: #{tpu_custom_call.1} parent=1 // pred_fallthru
      _
    // Predicated region
    $region22: #{tpu_custom_call.1} parent=1 // pred_check
      _
    $region23: #{tpu_custom_call.1} parent=1 // pred_check_branch
      %44 = sbr.rel (0) target = $region25
    $region24: #{tpu_custom_call.1} parent=1 // pred_region
      %45 = dma.done [#allocation6], 256
    $region25: #{tpu_custom_call.1} parent=1 // pred_fallthru
      _
    %v46 = vld [vmem:[#allocation2] sm:$0xff]
    %v47 = vld [vmem:[#allocation2 + $0x8] sm:$0xff]
    %v48 = vld [vmem:[#allocation5] sm:$0xff]
    %v49 = vld [vmem:[#allocation5 + $0x8] sm:$0xff]
    %v50 = vadd.f32 %v46, %v48
    %v51 = vadd.f32 %v47, %v49
    %52 = vadd.xlane.f32.xlu0 %v50
    %v53 = vpop.xlane.xlu0 %52
    %54 = vadd.xlane.f32.xlu0 %v51
    %v55 = vpop.xlane.xlu0 %54
    %v56 = vrcp.pop 128.0
    %v57 = vmul.f32 %v53, %v56
    %v58 = vmul.f32 %v55, %v56
    %v59 = vsub.f32 %v50, %v57
    %v60 = vsub.f32 %v51, %v58
    %v61 = vmul.f32 %v59, %v59
    %v62 = vmul.f32 %v60, %v60
    %63 = vadd.xlane.f32.xlu0 %v61
    %v64 = vpop.xlane.xlu0 %63
    %65 = vadd.xlane.f32.xlu0 %v62
    %v66 = vpop.xlane.xlu0 %65
    %v67 = vmul.f32 %v64, 0.007874016
    %v68 = vmul.f32 %v66, 0.007874016
    %v69 = vrsqrt.pop %v67
    %v70 = vmul.f32 %v67, %v69
    %vm71 = vcmp.eq.f32.partialorder %v67, inf
    %v72 = vsel %vm71, %v67, %v70
    %vm73 = vcmp.eq.f32.partialorder %v67, 0.0
    %v74 = vand.u32 %v67, 2147483648
    %v75 = vsel %vm73, %v74, %v72
    %v76 = vrsqrt.pop %v68
    %v77 = vmul.f32 %v68, %v76
    %vm78 = vcmp.eq.f32.partialorder %v68, inf
    %v79 = vsel %vm78, %v68, %v77
    %vm80 = vcmp.eq.f32.partialorder %v68, 0.0
    %v81 = vand.u32 %v68, 2147483648
    %v82 = vsel %vm80, %v81, %v79
    %v83 = vadd.f32 %v75, 1e-06
    %v84 = vadd.f32 %v82, 1e-06
    %v85 = vrcp.pop %v83
    %v86 = vrcp.pop %v84
    %v87 = vld [vmem:[%s2] sm:$0x1]
    %v88 = vld [vmem:[%s3] sm:$0x1]
    %v89 = vmul.f32 %v59, %v85
    %v90 = vmul.f32 %v60, %v86
    %v92 = vlaneseq
    %v93 = vshrl.u32 %v92, 7
    %v94 = vsub.s32 0, %v93
    %v95 = vrot.slane %v87, %v94
    %v97 = vmul.f32 %v89, %v95
    %v98 = vmul.f32 %v90, %v95
    %v100 = vlaneseq
    %v101 = vshrl.u32 %v100, 7
    %v102 = vsub.s32 0, %v101
    %v103 = vrot.slane %v88, %v102
    %v105 = vadd.f32 %v97, %v103
    %v106 = vadd.f32 %v98, %v103
    %107 = vst [vmem:[#allocation7] sm:$0xff] %v105
    %108 = vst [vmem:[#allocation7 + $0x8] sm:$0xff] %v106
    // Predicated region
    $region26: #{tpu_custom_call.1} parent=1 // pred_check
      _
    $region27: #{tpu_custom_call.1} parent=1 // pred_check_branch
      %110 = sbr.rel (0) target = $region29
    $region28: #{tpu_custom_call.1} parent=1 // pred_region
      %s112 = ssub.s32 256, 256
      %113 = vsyncadd [#allocation4], %s112
      %s114 = sshll.u32 [#allocation7], 4
      %s115 = int_to_ptr.vmem [resolvable:$true] %s114
      %120 = dma.vmem_to_hbm [thread:$0]  %s115, 256, %s4, [#allocation4], 128, 128, 8
    $region29: #{tpu_custom_call.1} parent=1 // pred_fallthru
      _
    // Predicated region
    $region30: #{tpu_custom_call.1} parent=1 // pred_check
      _
    $region31: #{tpu_custom_call.1} parent=1 // pred_check_branch
      %122 = sbr.rel (0) target = $region33
    $region32: #{tpu_custom_call.1} parent=1 // pred_region
      %123 = dma.done [#allocation4], 256
    $region33: #{tpu_custom_call.1} parent=1 // pred_fallthru
      _
    %124 = vsyncpa [#allocation3], 1
    %125 = vsyncpa [#allocation6], 1
    %126 = vsyncpa [#allocation4], 1

</llo_original>
